<compile_context>
chip_gen: v6e
topology: v6e:2x2x1
jax: 0.10.0
libtpu: 0.0.40
codegen_flags: <defaults>
</compile_context>

<pallas_src>
import functools
import math

import jax
import jax.numpy as jnp
import numpy as np
from jax import lax
from jax.experimental import pallas as pl
from jax.experimental.pallas import tpu as pltpu


# ---------------------------------------------------------------------------
# Tiled matmul with bias:  y = x @ w_t + b      (w_t already transposed: (K, N))
# ---------------------------------------------------------------------------
def _matmul_bias_kernel(x_ref, w_ref, b_ref, o_ref, acc_ref):
    @pl.when(pl.program_id(2) == 0)
    def _():
        # Fold the bias into the accumulator init (saves an epilogue add).
        acc_ref[...] = jnp.broadcast_to(
            b_ref[...].astype(jnp.float32), acc_ref.shape)

    acc_ref[...] += jnp.dot(x_ref[...], w_ref[...],
                            preferred_element_type=jnp.float32)

    @pl.when(pl.program_id(2) == pl.num_programs(2) - 1)
    def _():
        o_ref[...] = acc_ref[...].astype(o_ref.dtype)


def _linear(x, w_t, b, *, tm=128, tn=128, tk=512):
    """x: (M, K), w_t: (K, N), b: (N,)  ->  (M, N)."""
    M, K = x.shape
    _, N = w_t.shape
    tm, tn, tk = min(tm, M), min(tn, N), min(tk, K)
    assert M % tm == 0 and N % tn == 0 and K % tk == 0
    b2 = b.reshape(1, N)

    flops = 2 * M * N * K
    bytes_accessed = 4 * (M * K + K * N + M * N + N)

    return pl.pallas_call(
        _matmul_bias_kernel,
        out_shape=jax.ShapeDtypeStruct((M, N), x.dtype),
        grid_spec=pltpu.PrefetchScalarGridSpec(
            num_scalar_prefetch=0,
            grid=(M // tm, N // tn, K // tk),
            in_specs=[
                pl.BlockSpec((tm, tk), lambda i, j, k: (i, k)),
                pl.BlockSpec((tk, tn), lambda i, j, k: (k, j)),
                pl.BlockSpec((1, tn), lambda i, j, k: (0, j)),
            ],
            out_specs=pl.BlockSpec((tm, tn), lambda i, j, k: (i, j)),
            scratch_shapes=[pltpu.VMEM((tm, tn), jnp.float32)],
        ),
        compiler_params=pltpu.CompilerParams(
            dimension_semantics=("parallel", "parallel", "arbitrary")),
        cost_estimate=pl.CostEstimate(flops=flops, transcendentals=0,
                                      bytes_accessed=bytes_accessed),
    )(x, w_t, b2)


# ---------------------------------------------------------------------------
# Flash-attention forward (online softmax), non-causal, no mask.
# q, k, v: (BH, N, dh)  ->  o: (BH, N, dh)
# ---------------------------------------------------------------------------
def _flash_attn_kernel(q_ref, k_ref, v_ref, o_ref, m_sc, l_sc, acc_sc, *, scale):
    kv = pl.program_id(2)

    @pl.when(kv == 0)
    def _():
        m_sc[...] = jnp.full_like(m_sc, -jnp.inf)
        l_sc[...] = jnp.zeros_like(l_sc)
        acc_sc[...] = jnp.zeros_like(acc_sc)

    q = q_ref[0]                                           # (tq, dh)
    k = k_ref[0]                                           # (tk, dh)
    v = v_ref[0]                                           # (tk, dh)

    # s = q @ k^T * scale   (f32 accumulation on the MXU)
    s = lax.dot_general(q, k, (((1,), (1,)), ((), ())),
                        preferred_element_type=jnp.float32) * scale   # (tq, tk)

    m_prev = m_sc[...]                                     # (tq, 1)
    m_new = jnp.maximum(m_prev, s.max(axis=-1, keepdims=True))
    alpha = jnp.exp(m_prev - m_new)
    p = jnp.exp(s - m_new)                                 # (tq, tk)

    l_sc[...] = alpha * l_sc[...] + p.sum(axis=-1, keepdims=True)
    acc_sc[...] = alpha * acc_sc[...] + jnp.dot(
        p.astype(v.dtype), v, preferred_element_type=jnp.float32)
    m_sc[...] = m_new

    @pl.when(kv == pl.num_programs(2) - 1)
    def _():
        o_ref[0] = (acc_sc[...] / l_sc[...]).astype(o_ref.dtype)


def _flash_attention(q, k, v, *, tq=128, tk=128):
    BH, N, dh = q.shape
    tq, tk = min(tq, N), min(tk, N)
    assert N % tq == 0 and N % tk == 0
    scale = 1.0 / math.sqrt(dh)

    kernel = functools.partial(_flash_attn_kernel, scale=scale)
    flops = 4 * BH * N * N * dh                 # qk^T and pv matmuls
    bytes_accessed = 4 * 4 * BH * N * dh        # q, k, v, o (f32)

    return pl.pallas_call(
        kernel,
        out_shape=jax.ShapeDtypeStruct((BH, N, dh), q.dtype),
        grid_spec=pltpu.PrefetchScalarGridSpec(
            num_scalar_prefetch=0,
            grid=(BH, N // tq, N // tk),
            in_specs=[
                pl.BlockSpec((1, tq, dh), lambda b, qi, ki: (b, qi, 0)),
                pl.BlockSpec((1, tk, dh), lambda b, qi, ki: (b, ki, 0)),
                pl.BlockSpec((1, tk, dh), lambda b, qi, ki: (b, ki, 0)),
            ],
            out_specs=pl.BlockSpec((1, tq, dh), lambda b, qi, ki: (b, qi, 0)),
            scratch_shapes=[
                pltpu.VMEM((tq, 1), jnp.float32),    # running max  m
                pltpu.VMEM((tq, 1), jnp.float32),    # running sum  l
                pltpu.VMEM((tq, dh), jnp.float32),   # accumulator
            ],
        ),
        compiler_params=pltpu.CompilerParams(
            dimension_semantics=("parallel", "parallel", "arbitrary")),
        cost_estimate=pl.CostEstimate(flops=flops,
                                      transcendentals=BH * N * N,
                                      bytes_accessed=bytes_accessed),
    )(q, k, v)


# ---------------------------------------------------------------------------
# Full Attention.forward
# ---------------------------------------------------------------------------
def attention_forward(hidden_states, w_qkv, w_out, b_out, *, heads):
    """hidden_states: (B, N, D); w_qkv: (3*inner, D); w_out: (D, inner); b_out: (D,)."""
    B, N, D = hidden_states.shape
    inner3 = w_qkv.shape[0]
    inner = inner3 // 3
    dh = inner // heads

    x2 = hidden_states.reshape(B * N, D)

    # QKV projection (to_qkv has bias=False)
    qkv = _linear(x2, w_qkv.T, jnp.zeros((inner3,), hidden_states.dtype))
    qkv = qkv.reshape(B, N, 3, heads, dh)

    # 'b n (h d) -> (b h) n d'
    def to_bh(t):
        return t.transpose(0, 2, 1, 3).reshape(B * heads, N, dh)

    q = to_bh(qkv[:, :, 0])
    k = to_bh(qkv[:, :, 1])
    v = to_bh(qkv[:, :, 2])

    o = _flash_attention(q, k, v)                                  # (B*H, N, dh)

    # '(b h) n d -> (b n) (h d)'
    o = o.reshape(B, heads, N, dh).transpose(0, 2, 1, 3).reshape(B * N, inner)

    out = _linear(o, w_out.T, b_out)                               # (B*N, D)
    return out.reshape(B, N, D)


# ---------------------------------------------------------------------------
# Pure-JAX reference (matches the PyTorch module's default forward path)
# ---------------------------------------------------------------------------
def reference_forward(hidden_states, w_qkv, w_out, b_out, *, heads):
    B, N, D = hidden_states.shape
    inner = w_qkv.shape[0] // 3
    dh = inner // heads

    qkv = jnp.einsum('bnd,od->bno', hidden_states, w_qkv)
    q, k, v = jnp.split(qkv, 3, axis=-1)

    def split_heads(t):
        return t.reshape(B, N, heads, dh).transpose(0, 2, 1, 3)

    q, k, v = map(split_heads, (q, k, v))
    s = jnp.einsum('bhqd,bhkd->bhqk', q, k) / jnp.sqrt(dh)
    p = jax.nn.softmax(s, axis=-1)
    o = jnp.einsum('bhqk,bhkd->bhqd', p, v)
    o = o.transpose(0, 2, 1, 3).reshape(B, N, inner)
    return jnp.einsum('bni,oi->bno', o, w_out) + b_out


if __name__ == "__main__":
    # Attention(query_dim=128, heads=4, dim_head=32)  on  (B=2, N=128, D=128)
    B, N, D = 2, 128, 128
    heads, dim_head = 4, 32
    inner = heads * dim_head

    key = jax.random.PRNGKey(0)
    kx, kq, ko, kb = jax.random.split(key, 4)

    x = jax.random.normal(kx, (B, N, D), jnp.float32)

    # PyTorch nn.Linear-style uniform init
    bound_qkv = 1.0 / math.sqrt(D)
    w_qkv = jax.random.uniform(kq, (3 * inner, D), jnp.float32,
                               -bound_qkv, bound_qkv)
    bound_out = 1.0 / math.sqrt(inner)
    w_out = jax.random.uniform(ko, (D, inner), jnp.float32,
                               -bound_out, bound_out)
    b_out = jax.random.uniform(kb, (D,), jnp.float32, -bound_out, bound_out)

    out = attention_forward(x, w_qkv, w_out, b_out, heads=heads)
    jax.block_until_ready(out)

    ref = reference_forward(x, w_qkv, w_out, b_out, heads=heads)
    assert out.shape == (B, N, D)
    np.testing.assert_allclose(np.asarray(out), np.asarray(ref),
                               atol=1e-4, rtol=1e-4)
    print("KERNEL_OK")
</pallas_src>

<mosaic_0001>
module attributes {stable_mosaic.version = 11 : i64} {
  func.func @_matmul_bias_kernel(%arg0: i32, %arg1: i32, %arg2: i32, %arg3: memref<128x128xf32, #tpu.memory_space<vmem>>, %arg4: memref<128x128xf32, #tpu.memory_space<vmem>>, %arg5: memref<1x128xf32, #tpu.memory_space<vmem>>, %arg6: memref<128x128xf32, #tpu.memory_space<vmem>>, %arg7: memref<128x128xf32, #tpu.memory_space<vmem>>) attributes {dimension_semantics = [#tpu.dimension_semantics<parallel>, #tpu.dimension_semantics<parallel>, #tpu.dimension_semantics<arbitrary>], iteration_bounds = array<i64: 2, 3, 1>, scalar_prefetch = 0 : i64, scratch_operands = 1 : i64, tpu.core_type = #tpu.core_type<tc>, window_params = [{transform_indices = @transform_0, window_bounds = array<i64: 128, 128>}, {transform_indices = @transform_1, window_bounds = array<i64: 128, 128>}, {transform_indices = @transform_2, window_bounds = array<i64: 1, 128>}, {transform_indices = @transform_3, window_bounds = array<i64: 128, 128>}]} {
    %c0_i32 = arith.constant 0 : i32
    %0 = arith.cmpi eq, %arg2, %c0_i32 : i32
    %1 = arith.extui %0 : i1 to i32
    %c0_i32_0 = arith.constant 0 : i32
    %2 = arith.cmpi ne, %1, %c0_i32_0 : i32
    scf.if %2 {
      %c0_10 = arith.constant 0 : index
      %c0_11 = arith.constant 0 : index
      %12 = vector.load %arg5[%c0_10, %c0_11] : memref<1x128xf32, #tpu.memory_space<vmem>>, vector<1x128xf32>
      %13 = vector.shape_cast %12 : vector<1x128xf32> to vector<1x128xf32>
      %14 = vector.broadcast %13 : vector<1x128xf32> to vector<128x128xf32>
      %c0_12 = arith.constant 0 : index
      %c0_13 = arith.constant 0 : index
      %15 = vector.load %arg7[%c0_12, %c0_13] : memref<128x128xf32, #tpu.memory_space<vmem>>, vector<128x128xf32>
      tpu.vector_store %arg7[%c0_12, %c0_13], %14 {strides = array<i32>} : memref<128x128xf32, #tpu.memory_space<vmem>>, vector<128x128xf32>,
    } else {
    }
    %c0 = arith.constant 0 : index
    %c0_1 = arith.constant 0 : index
    %3 = vector.load %arg7[%c0, %c0_1] : memref<128x128xf32, #tpu.memory_space<vmem>>, vector<128x128xf32>
    %c0_2 = arith.constant 0 : index
    %c0_3 = arith.constant 0 : index
    %4 = vector.load %arg3[%c0_2, %c0_3] : memref<128x128xf32, #tpu.memory_space<vmem>>, vector<128x128xf32>
    %c0_4 = arith.constant 0 : index
    %c0_5 = arith.constant 0 : index
    %5 = vector.load %arg4[%c0_4, %c0_5] : memref<128x128xf32, #tpu.memory_space<vmem>>, vector<128x128xf32>
    %cst = arith.constant dense<0.000000e+00> : vector<128x128xf32>
    %6 = tpu.matmul %4, %5, %cst {dimension_numbers = #tpu.dot_dimension_numbers<[1], [0], [0], [1], [0, 0, 1, 1], [], []>} : vector<128x128xf32>, vector<128x128xf32>, vector<128x128xf32> -> vector<128x128xf32>
    %7 = arith.addf %3, %6 : vector<128x128xf32>
    %c0_6 = arith.constant 0 : index
    %c0_7 = arith.constant 0 : index
    %8 = vector.load %arg7[%c0_6, %c0_7] : memref<128x128xf32, #tpu.memory_space<vmem>>, vector<128x128xf32>
    tpu.vector_store %arg7[%c0_6, %c0_7], %7 {strides = array<i32>} : memref<128x128xf32, #tpu.memory_space<vmem>>, vector<128x128xf32>,
    %c0_i32_8 = arith.constant 0 : i32
    %9 = arith.cmpi eq, %arg2, %c0_i32_8 : i32
    %10 = arith.extui %9 : i1 to i32
    %c0_i32_9 = arith.constant 0 : i32
    %11 = arith.cmpi ne, %10, %c0_i32_9 : i32
    scf.if %11 {
      %c0_10 = arith.constant 0 : index
      %c0_11 = arith.constant 0 : index
      %12 = vector.load %arg7[%c0_10, %c0_11] : memref<128x128xf32, #tpu.memory_space<vmem>>, vector<128x128xf32>
      %c0_12 = arith.constant 0 : index
      %c0_13 = arith.constant 0 : index
      %13 = vector.load %arg6[%c0_12, %c0_13] : memref<128x128xf32, #tpu.memory_space<vmem>>, vector<128x128xf32>
      tpu.vector_store %arg6[%c0_12, %c0_13], %12 {strides = array<i32>} : memref<128x128xf32, #tpu.memory_space<vmem>>, vector<128x128xf32>,
    } else {
    }
    return
  }
  func.func @transform_0(%arg0: i32, %arg1: i32, %arg2: i32) -> (i32, i32) {
    %c0_i32 = arith.constant 0 : i32
    return %arg0, %arg2 : i32, i32
  }
  func.func @transform_1(%arg0: i32, %arg1: i32, %arg2: i32) -> (i32, i32) {
    %c0_i32 = arith.constant 0 : i32
    return %arg2, %arg1 : i32, i32
  }
  func.func @transform_2(%arg0: i32, %arg1: i32, %arg2: i32) -> (i32, i32) {
    %c0_i32 = arith.constant 0 : i32
    %c0_i32_0 = arith.constant 0 : i32
    return %c0_i32, %arg1 : i32, i32
  }
  func.func @transform_3(%arg0: i32, %arg1: i32, %arg2: i32) -> (i32, i32) {
    %c0_i32 = arith.constant 0 : i32
    return %arg0, %arg1 : i32, i32
  }
}

</mosaic_0001>

<llo_original>
// kernel: tpu_custom_call.1
$region0: #{tpu_custom_call.1}
  #allocation0 [shape = 'u32[]', space=smem, size = 0x4, offset = 0x4, fixed_abs, tag = 'smem constant byte address 0x4 - core index']
  #allocation1 [shape = 'u32[144,128]{1,0:T(1,128)}', space=vmem, size = 0x12000, scoped, tag = 'internal scratch']
  #allocation2 [shape = 'f32[128,128]{1,0:T(8,128)}', space=vmem, size = 0x10000, scoped, tag = 'scratch operand']
  %s0 = inlined_call_operand.hbm [shape: f32[256,128], index: 0, kind: input, shape index: {}]
  %s1 = inlined_call_operand.hbm [shape: f32[128,384], index: 1, kind: input, shape index: {}]
  %s2 = inlined_call_operand.vmem [shape: f32[1,384], index: 2, kind: input, shape index: {}]
  %s3 = inlined_call_operand.hbm [shape: f32[256,384], index: 3, kind: output, shape index: {}]
  %s4 = sld [smem:[#allocation0]]
  $region61: #{tpu_custom_call.1} parent=0
    _
  %s6 = ssub.s32 1, %s4
  %s7 = scalar_select 0, %s6, %s4
  $region1: #{tpu_custom_call.1} parent=0
    #allocation3 [shape = 'u8[131072]{0}', space=vmem, size = 0x20000, scoped, tag = 'input window, operand 0']
    #allocation4 [shape = 's32[2]{0}', space=sflag, size = 0x8, scoped, tag = 'scoped memory for tpu_custom_call.1']
    #allocation5 [shape = 's32[2]{0}', space=sflag, size = 0x8, scoped, tag = 'scoped memory for tpu_custom_call.1']
    #allocation6 [shape = 'u8[131072]{0}', space=vmem, size = 0x20000, scoped, tag = 'input window, operand 1']
    #allocation7 [shape = 's32[2]{0}', space=sflag, size = 0x8, scoped, tag = 'scoped memory for tpu_custom_call.1']
    #allocation8 [shape = 'u8[131072]{0}', space=vmem, size = 0x20000, scoped, tag = 'output window, operand 0']
    %8 = vsyncpa [#allocation4], 0
    %s9 = scalar_lea.sflag [#allocation4], 1
    %10 = vsyncpa %s9, 0
    %11 = vsyncpa [#allocation7], 0
    %s12 = scalar_lea.sflag [#allocation7], 1
    %13 = vsyncpa %s12, 0
    %14 = vsyncpa [#allocation5], 0
    %s15 = scalar_lea.sflag [#allocation5], 1
    %16 = vsyncpa %s15, 0
    loop: start=0, step=1, limit=8
    $region2: #{tpu_custom_call.1} parent=1 // loop_pre_header
      _
    $region3: #{tpu_custom_call.1} parent=1 // loop_header
      %s18 = sphi 0, %s22
      %p19 = scmp.ge.s32.totalorder %s18, 8
      %s25 = sphi 0, %s44
      %s26 = sphi 0, %s40
      %s27 = sphi 0, %s36
      %s28 = sphi 0, %s25
      %s29 = sphi 0, %s26
      %s30 = sphi 0, %s27
      %s31 = sphi 0, %s28
      %s32 = sphi 0, %s29
      %s33 = sphi 0, %s30
      %s49 = sphi 0, %s51
      %s52 = sphi 0, %s49
      %s53 = sphi 0, %s52
      %s69 = sphi 0, %s53
      %s77 = sphi 0, %s79
      %s80 = sphi 0, %s77
      %s81 = sphi 0, %s80
      %s97 = sphi 0, %s81
      %s103 = sphi 0, %s105
      %s106 = sphi 0, %s103
      %s107 = sphi 0, %s106
      %s123 = sphi 0, %s107
      %s131 = sphi 0, %s133
      %s134 = sphi 0, %s131
      %s135 = sphi 0, %s134
      %s151 = sphi 0, %s135
    $region4: #{tpu_custom_call.1} parent=1 // loop_header_branch
      %21 = sbr.rel (%p19) target = $region8
    $region5: #{tpu_custom_call.1} parent=1 // loop_body
      %s23 = ssub.s32 %s18, 1
      %s24 = ssub.s32 %s18, 2
      %s34 = sadd.s32 1, %s27
      %p35 = scmp.ge.s32.totalorder %s34, 1
      %s36 = scalar_select %p35, 0, %s34
      %s37 = sadd.s32 1, %s26
      %s38 = scalar_select %p35, %s37, %s26
      %p39 = scmp.ge.s32.totalorder %s38, 3
      %s40 = scalar_select %p39, 0, %s38
      %s41 = sadd.s32 1, %s25
      %s42 = scalar_select %p39, %s41, %s25
      %p43 = scmp.ge.s32.totalorder %s42, 2
      %s44 = scalar_select %p43, 0, %s42
      %s45 = ssub.s32 %s25, %s44
      %s46 = ssub.s32 %s27, %s36
      %s47 = sor.u32 %s45, %s46
      %p48 = scmp.eq.s32.totalorder %s47, 0
      %s50 = sadd.s32 %s49, 1
      %s51 = scalar_select %p48, %s49, %s50
      %p54 = pneg %p48
      %p55 = scmp.eq.s32.totalorder %s18, 5
      %p56 = por %p54, %p55
      %p57 = scmp.ne.s32.totalorder %s49, %s52
      %p58 = scmp.eq.s32.totalorder %s18, 0
      %p59 = por %p57, %p58
      %p60 = scmp.ne.s32.totalorder %s49, %s52
      %p61 = scmp.eq.s32.totalorder %s23, 5
      %p62 = por %p60, %p61
      %p63 = scmp.ne.s32.totalorder %s52, %s53
      %p64 = scmp.eq.s32.totalorder %s23, 0
      %p65 = por %p63, %p64
      %p66 = scmp.ne.s32.totalorder %s52, %s53
      %p67 = scmp.eq.s32.totalorder %s24, 5
      %p68 = por %p66, %p67
      %p70 = scmp.ne.s32.totalorder %s53, %s69
      %p71 = scmp.eq.s32.totalorder %s24, 0
      %p72 = por %p70, %p71
      %s73 = ssub.s32 %s27, %s36
      %s74 = ssub.s32 %s26, %s40
      %s75 = sor.u32 %s73, %s74
      %p76 = scmp.eq.s32.totalorder %s75, 0
      %s78 = sadd.s32 %s77, 1
      %s79 = scalar_select %p76, %s77, %s78
      %p82 = pneg %p76
      %p83 = scmp.eq.s32.totalorder %s18, 5
      %p84 = por %p82, %p83
      %p85 = scmp.ne.s32.totalorder %s77, %s80
      %p86 = scmp.eq.s32.totalorder %s18, 0
      %p87 = por %p85, %p86
      %p88 = scmp.ne.s32.totalorder %s77, %s80
      %p89 = scmp.eq.s32.totalorder %s23, 5
      %p90 = por %p88, %p89
      %p91 = scmp.ne.s32.totalorder %s80, %s81
      %p92 = scmp.eq.s32.totalorder %s23, 0
      %p93 = por %p91, %p92
      %p94 = scmp.ne.s32.totalorder %s80, %s81
      %p95 = scmp.eq.s32.totalorder %s24, 5
      %p96 = por %p94, %p95
      %p98 = scmp.ne.s32.totalorder %s81, %s97
      %p99 = scmp.eq.s32.totalorder %s24, 0
      %p100 = por %p98, %p99
      %s101 = ssub.s32 %s26, %s40
      %p102 = scmp.eq.s32.totalorder %s101, 0
      %s104 = sadd.s32 %s103, 1
      %s105 = scalar_select %p102, %s103, %s104
      %p108 = pneg %p102
      %p109 = scmp.eq.s32.totalorder %s18, 5
      %p110 = por %p108, %p109
      %p111 = scmp.ne.s32.totalorder %s103, %s106
      %p112 = scmp.eq.s32.totalorder %s18, 0
      %p113 = por %p111, %p112
      %p114 = scmp.ne.s32.totalorder %s103, %s106
      %p115 = scmp.eq.s32.totalorder %s23, 5
      %p116 = por %p114, %p115
      %p117 = scmp.ne.s32.totalorder %s106, %s107
      %p118 = scmp.eq.s32.totalorder %s23, 0
      %p119 = por %p117, %p118
      %p120 = scmp.ne.s32.totalorder %s106, %s107
      %p121 = scmp.eq.s32.totalorder %s24, 5
      %p122 = por %p120, %p121
      %p124 = scmp.ne.s32.totalorder %s107, %s123
      %p125 = scmp.eq.s32.totalorder %s24, 0
      %p126 = por %p124, %p125
      %s127 = ssub.s32 %s25, %s44
      %s128 = ssub.s32 %s26, %s40
      %s129 = sor.u32 %s127, %s128
      %p130 = scmp.eq.s32.totalorder %s129, 0
      %s132 = sadd.s32 %s131, 1
      %s133 = scalar_select %p130, %s131, %s132
      %p136 = pneg %p130
      %p137 = scmp.eq.s32.totalorder %s18, 5
      %p138 = por %p136, %p137
      %p139 = scmp.ne.s32.totalorder %s131, %s134
      %p140 = scmp.eq.s32.totalorder %s18, 0
      %p141 = por %p139, %p140
      %p142 = scmp.ne.s32.totalorder %s131, %s134
      %p143 = scmp.eq.s32.totalorder %s23, 5
      %p144 = por %p142, %p143
      %p145 = scmp.ne.s32.totalorder %s134, %s135
      %p146 = scmp.eq.s32.totalorder %s23, 0
      %p147 = por %p145, %p146
      %p148 = scmp.ne.s32.totalorder %s134, %s135
      %p149 = scmp.eq.s32.totalorder %s24, 5
      %p150 = por %p148, %p149
      %p152 = scmp.ne.s32.totalorder %s135, %s151
      %p153 = scmp.eq.s32.totalorder %s24, 0
      %p154 = por %p152, %p153
      %p155 = scmp.le.s32.totalorder 1, %s18
      %p156 = scmp.lt.s32.totalorder %s18, 7
      %p157 = pnand %p155, %p156
      %p158 = pneg %p157
      // Predicated region
      $region9: #{tpu_custom_call.1} parent=5 // pred_check
        _
      $region10: #{tpu_custom_call.1} parent=5 // pred_check_branch
        %160 = sbr.rel (%p157) target = $region12
      $region11: #{tpu_custom_call.1} parent=5 // pred_region
        %s161 = ssub.s32 %s18, 1
      $region12: #{tpu_custom_call.1} parent=5 // pred_fallthru
        _
      %p162 = scmp.lt.s32.totalorder %s18, 6
      // Predicated region
      $region13: #{tpu_custom_call.1} parent=5 // pred_check
        %p163 = pneg %p162
      $region14: #{tpu_custom_call.1} parent=5 // pred_check_branch
        %165 = sbr.rel (%p163) target = $region16
      $region15: #{tpu_custom_call.1} parent=5 // pred_region
        // Predicated region
        $region17: #{tpu_custom_call.1} parent=15 // pred_check
          %p166 = pneg %p59
        $region18: #{tpu_custom_call.1} parent=15 // pred_check_branch
          %168 = sbr.rel (%p166) target = $region20
        $region19: #{tpu_custom_call.1} parent=15 // pred_region
          %s169 = sand.u32 %s49, 1
          %s170 = scalar_lea.sflag [#allocation4], %s169
          %s171 = sand.u32 %s49, 1
          %s172 = smul.addr %s171, 128
          %s173 = scalar_lea.vmem [#allocation3], %s172
          %s174 = smul.u32 16, %s25
          %s176 = ssub.s32 2048, 2048
          %177 = vsyncadd %s170, %s176
          %s178 = sadd.s32 %s27, %s174
          %s179 = smul.addr %s178, 128
          %s180 = scalar_lea.hbm %s0, %s179
          %s181 = sshll.u32 %s173, 4
          %s182 = int_to_ptr.vmem [resolvable:$true] %s181
          %187 = dma.hbm_to_vmem [thread:$0]  %s180, 2048, %s182, %s170, 128, 128, 8
        $region20: #{tpu_custom_call.1} parent=15 // pred_fallthru
          _
        // Predicated region
        $region21: #{tpu_custom_call.1} parent=15 // pred_check
          %p188 = pneg %p87
        $region22: #{tpu_custom_call.1} parent=15 // pred_check_branch
          %190 = sbr.rel (%p188) target = $region24
        $region23: #{tpu_custom_call.1} parent=15 // pred_region
          %s191 = sand.u32 %s77, 1
          %s192 = scalar_lea.sflag [#allocation7], %s191
          %s193 = sand.u32 %s77, 1
          %s194 = smul.addr %s193, 128
          %s195 = scalar_lea.vmem [#allocation6], %s194
          %s196 = smul.u32 16, %s27
          %s198 = ssub.s32 2048, 2048
          %199 = vsyncadd %s192, %s198
          %s200 = smul.addr %s196, 3
          %s201 = sadd.s32 %s26, %s200
          %s202 = smul.addr %s201, 128
          %s203 = scalar_lea.hbm %s1, %s202
          %s204 = sshll.u32 %s195, 4
          %s205 = int_to_ptr.vmem [resolvable:$true] %s204
          %210 = dma.hbm_to_vmem [thread:$0]  %s203, 2048, %s205, %s192, 384, 128, 8
        $region24: #{tpu_custom_call.1} parent=15 // pred_fallthru
          _
        // Predicated region
        $region25: #{tpu_custom_call.1} parent=15 // pred_check
          %p211 = pneg %p113
        $region26: #{tpu_custom_call.1} parent=15 // pred_check_branch
          %213 = sbr.rel (%p211) target = $region28
        $region27: #{tpu_custom_call.1} parent=15 // pred_region
          %p214 = scmp.lt.s32.totalorder %s26, 2
          %s215 = scalar_select %p214, %s26, 2
          %s216 = scalar_lea.vmem %s2, %s215
        $region28: #{tpu_custom_call.1} parent=15 // pred_fallthru
          _
      $region16: #{tpu_custom_call.1} parent=5 // pred_fallthru
        _
      %p217 = scmp.le.s32.totalorder 1, %s18
      %p218 = scmp.lt.s32.totalorder %s18, 7
      %p219 = pnand %p217, %p218
      %p220 = pneg %p219
      // Predicated region
      $region29: #{tpu_custom_call.1} parent=5 // pred_check
        _
      $region30: #{tpu_custom_call.1} parent=5 // pred_check_branch
        %222 = sbr.rel (%p219) target = $region32
      $region31: #{tpu_custom_call.1} parent=5 // pred_region
        %s223 = ssub.s32 %s18, 1
        %s224 = sand.u32 %s52, 1
        %s225 = scalar_lea.sflag [#allocation4], %s224
        %s226 = sand.u32 %s52, 1
        %s227 = smul.addr %s226, 128
        %s228 = scalar_lea.vmem [#allocation3], %s227
        // Predicated region
        $region33: #{tpu_custom_call.1} parent=31 // pred_check
          %p229 = pneg %p65
        $region34: #{tpu_custom_call.1} parent=31 // pred_check_branch
          %231 = sbr.rel (%p229) target = $region36
        $region35: #{tpu_custom_call.1} parent=31 // pred_region
          %232 = dma.done %s225, 2048
        $region36: #{tpu_custom_call.1} parent=31 // pred_fallthru
          _
        %s233 = sand.u32 %s80, 1
        %s234 = scalar_lea.sflag [#allocation7], %s233
        %s235 = sand.u32 %s80, 1
        %s236 = smul.addr %s235, 128
        %s237 = scalar_lea.vmem [#allocation6], %s236
        // Predicated region
        $region37: #{tpu_custom_call.1} parent=31 // pred_check
          %p238 = pneg %p93
        $region38: #{tpu_custom_call.1} parent=31 // pred_check_branch
          %240 = sbr.rel (%p238) target = $region40
        $region39: #{tpu_custom_call.1} parent=31 // pred_region
          %241 = dma.done %s234, 2048
        $region40: #{tpu_custom_call.1} parent=31 // pred_fallthru
          _
        %s242 = sand.u32 %s52, 1
        %s243 = scalar_lea.sflag [#allocation4], %s242
        %s244 = sand.u32 %s52, 1
        %s245 = smul.addr %s244, 128
        %s246 = scalar_lea.vmem [#allocation3], %s245
        %p247 = pneg %p65
        %p248 = pneg %p62
        %s249 = sand.u32 %s80, 1
        %s250 = scalar_lea.sflag [#allocation7], %s249
        %s251 = sand.u32 %s80, 1
        %s252 = smul.addr %s251, 128
        %s253 = scalar_lea.vmem [#allocation6], %s252
        %p254 = pneg %p93
        %p255 = pneg %p90
        %p256 = scmp.lt.s32.totalorder %s29, 2
        %s257 = scalar_select %p256, %s29, 2
        %s258 = scalar_lea.vmem %s2, %s257
        %p259 = pneg %p119
        %p260 = pneg %p116
        %p261 = pneg %p147
        %p262 = pneg %p144
        %s263 = sand.u32 %s134, 1
        %s264 = scalar_lea.sflag [#allocation5], %s263
        %s265 = sand.u32 %s134, 1
        %s266 = smul.addr %s265, 128
        %s267 = scalar_lea.vmem [#allocation8], %s266
        %s268 = smul.u32 16, %s28
        %s269 = smul.u32 16, %s30
        %p270 = scmp.lt.s32.totalorder %s29, 2
        %s271 = scalar_select %p270, %s29, 2
        %s272 = scalar_lea.vmem %s2, %s271
        %s273 = smul.u32 16, %s28
        %p274 = scmp.eq.s32.totalorder %s30, 0
        // Predicated region
        $region41: #{tpu_custom_call.1} parent=31 // pred_check
          %p275 = pneg %p274
        $region42: #{tpu_custom_call.1} parent=31 // pred_check_branch
          %277 = sbr.rel (%p275) target = $region44
        $region43: #{tpu_custom_call.1} parent=31 // pred_region
          %v278 = vld [vmem:[%s272] sm:$0x1]
          %v280 = vlaneseq
          %v281 = vshrl.u32 %v280, 7
          %v282 = vsub.s32 0, %v281
          %v283 = vrot.slane %v278, %v282
          %285 = vst [vmem:[#allocation2] sm:$0xff] %v283
          %286 = vst [vmem:[#allocation2 + $0x8] sm:$0xff] %v283
          %287 = vst [vmem:[#allocation2 + $0x10] sm:$0xff] %v283
          %288 = vst [vmem:[#allocation2 + $0x18] sm:$0xff] %v283
          %289 = vst [vmem:[#allocation2 + $0x20] sm:$0xff] %v283
          %290 = vst [vmem:[#allocation2 + $0x28] sm:$0xff] %v283
          %291 = vst [vmem:[#allocation2 + $0x30] sm:$0xff] %v283
          %292 = vst [vmem:[#allocation2 + $0x38] sm:$0xff] %v283
          %293 = vst [vmem:[#allocation2 + $0x40] sm:$0xff] %v283
          %294 = vst [vmem:[#allocation2 + $0x48] sm:$0xff] %v283
          %295 = vst [vmem:[#allocation2 + $0x50] sm:$0xff] %v283
          %296 = vst [vmem:[#allocation2 + $0x58] sm:$0xff] %v283
          %297 = vst [vmem:[#allocation2 + $0x60] sm:$0xff] %v283
          %298 = vst [vmem:[#allocation2 + $0x68] sm:$0xff] %v283
          %299 = vst [vmem:[#allocation2 + $0x70] sm:$0xff] %v283
          %300 = vst [vmem:[#allocation2 + $0x78] sm:$0xff] %v283
        $region44: #{tpu_custom_call.1} parent=31 // pred_fallthru
          _
        %v301 = vld [vmem:[#allocation2] sm:$0xff]
        %v302 = vld [vmem:[#allocation2 + $0x8] sm:$0xff]
        %v303 = vld [vmem:[#allocation2 + $0x10] sm:$0xff]
        %v304 = vld [vmem:[#allocation2 + $0x18] sm:$0xff]
        %v305 = vld [vmem:[#allocation2 + $0x20] sm:$0xff]
        %v306 = vld [vmem:[#allocation2 + $0x28] sm:$0xff]
        %v307 = vld [vmem:[#allocation2 + $0x30] sm:$0xff]
        %v308 = vld [vmem:[#allocation2 + $0x38] sm:$0xff]
        %v309 = vld [vmem:[#allocation2 + $0x40] sm:$0xff]
        %v310 = vld [vmem:[#allocation2 + $0x48] sm:$0xff]
        %v311 = vld [vmem:[#allocation2 + $0x50] sm:$0xff]
        %v312 = vld [vmem:[#allocation2 + $0x58] sm:$0xff]
        %v313 = vld [vmem:[#allocation2 + $0x60] sm:$0xff]
        %v314 = vld [vmem:[#allocation2 + $0x68] sm:$0xff]
        %v315 = vld [vmem:[#allocation2 + $0x70] sm:$0xff]
        %v316 = vld [vmem:[#allocation2 + $0x78] sm:$0xff]
        %v317 = vld [vmem:[%s228] sm:$0xff]
        %v318 = vld [vmem:[%s228 + $0x8] sm:$0xff]
        %v319 = vld [vmem:[%s228 + $0x10] sm:$0xff]
        %v320 = vld [vmem:[%s228 + $0x18] sm:$0xff]
        %v321 = vld [vmem:[%s228 + $0x20] sm:$0xff]
        %v322 = vld [vmem:[%s228 + $0x28] sm:$0xff]
        %v323 = vld [vmem:[%s228 + $0x30] sm:$0xff]
        %v324 = vld [vmem:[%s228 + $0x38] sm:$0xff]
        %v325 = vld [vmem:[%s228 + $0x40] sm:$0xff]
        %v326 = vld [vmem:[%s228 + $0x48] sm:$0xff]
        %v327 = vld [vmem:[%s228 + $0x50] sm:$0xff]
        %v328 = vld [vmem:[%s228 + $0x58] sm:$0xff]
        %v329 = vld [vmem:[%s228 + $0x60] sm:$0xff]
        %v330 = vld [vmem:[%s228 + $0x68] sm:$0xff]
        %v331 = vld [vmem:[%s228 + $0x70] sm:$0xff]
        %v332 = vld [vmem:[%s228 + $0x78] sm:$0xff]
        %v333 = vld [vmem:[%s237] sm:$0xff]
        %v334 = vld [vmem:[%s237 + $0x8] sm:$0xff]
        %v335 = vld [vmem:[%s237 + $0x10] sm:$0xff]
        %v336 = vld [vmem:[%s237 + $0x18] sm:$0xff]
        %v337 = vld [vmem:[%s237 + $0x20] sm:$0xff]
        %v338 = vld [vmem:[%s237 + $0x28] sm:$0xff]
        %v339 = vld [vmem:[%s237 + $0x30] sm:$0xff]
        %v340 = vld [vmem:[%s237 + $0x38] sm:$0xff]
        %v341 = vld [vmem:[%s237 + $0x40] sm:$0xff]
        %v342 = vld [vmem:[%s237 + $0x48] sm:$0xff]
        %v343 = vld [vmem:[%s237 + $0x50] sm:$0xff]
        %v344 = vld [vmem:[%s237 + $0x58] sm:$0xff]
        %v345 = vld [vmem:[%s237 + $0x60] sm:$0xff]
        %v346 = vld [vmem:[%s237 + $0x68] sm:$0xff]
        %v347 = vld [vmem:[%s237 + $0x70] sm:$0xff]
        %v348 = vld [vmem:[%s237 + $0x78] sm:$0xff]
        %349 = vmatprep.subr.mxu0 0.0
        %350 = vmatpush1.msra.mxu0 %v348
        %351 = vmatprep.subr.mxu0 0.0
        %352 = vmatpush1.msra.mxu0 %v347
        %353 = vmatprep.subr.mxu0 0.0
        %354 = vmatpush1.msra.mxu0 %v346
        %355 = vmatprep.subr.mxu0 0.0
        %356 = vmatpush1.msra.mxu0 %v345
        %357 = vmatprep.subr.mxu0 0.0
        %358 = vmatpush1.msra.mxu0 %v344
        %359 = vmatprep.subr.mxu0 0.0
        %360 = vmatpush1.msra.mxu0 %v343
        %361 = vmatprep.subr.mxu0 0.0
        %362 = vmatpush1.msra.mxu0 %v342
        %363 = vmatprep.subr.mxu0 0.0
        %364 = vmatpush1.msra.mxu0 %v341
        %365 = vmatprep.subr.mxu0 0.0
        %366 = vmatpush1.msra.mxu0 %v340
        %367 = vmatprep.subr.mxu0 0.0
        %368 = vmatpush1.msra.mxu0 %v339
        %369 = vmatprep.subr.mxu0 0.0
        %370 = vmatpush1.msra.mxu0 %v338
        %371 = vmatprep.subr.mxu0 0.0
        %372 = vmatpush1.msra.mxu0 %v337
        %373 = vmatprep.subr.mxu0 0.0
        %374 = vmatpush1.msra.mxu0 %v336
        %375 = vmatprep.subr.mxu0 0.0
        %376 = vmatpush1.msra.mxu0 %v335
        %377 = vmatprep.subr.mxu0 0.0
        %378 = vmatpush1.msra.mxu0 %v334
        %379 = vmatprep.subr.mxu0 0.0
        %380 = vmatpush1.msra.mxu0 %v333
        %381 = vmatprep.subr.mxu0 0.0
        %382 = vmatpush2.msra.mxu0 0.0
        %383 = vmatprep.subr.mxu0 0.0
        %384 = vmatpush2.msra.mxu0 0.0
        %385 = vmatprep.subr.mxu0 0.0
        %386 = vmatpush2.msra.mxu0 0.0
        %387 = vmatprep.subr.mxu0 0.0
        %388 = vmatpush2.msra.mxu0 0.0
        %389 = vmatprep.subr.mxu0 0.0
        %390 = vmatpush2.msra.mxu0 0.0
        %391 = vmatprep.subr.mxu0 0.0
        %392 = vmatpush2.msra.mxu0 0.0
        %393 = vmatprep.subr.mxu0 0.0
        %394 = vmatpush2.msra.mxu0 0.0
        %395 = vmatprep.subr.mxu0 0.0
        %396 = vmatpush2.msra.mxu0 0.0
        %397 = vmatprep.subr.mxu0 0.0
        %398 = vmatpush2.msra.mxu0 0.0
        %399 = vmatprep.subr.mxu0 0.0
        %400 = vmatpush2.msra.mxu0 0.0
        %401 = vmatprep.subr.mxu0 0.0
        %402 = vmatpush2.msra.mxu0 0.0
        %403 = vmatprep.subr.mxu0 0.0
        %404 = vmatpush2.msra.mxu0 0.0
        %405 = vmatprep.subr.mxu0 0.0
        %406 = vmatpush2.msra.mxu0 0.0
        %407 = vmatprep.subr.mxu0 0.0
        %408 = vmatpush2.msra.mxu0 0.0
        %409 = vmatprep.subr.mxu0 0.0
        %410 = vmatpush2.msra.mxu0 0.0
        %411 = vmatprep.subr.mxu0 0.0
        %412 = vmatpush2.msra.mxu0 0.0
        %413 = vmatprep.mubr.f32.mxu0 0.0
        %414 = vmatmul.mubr.f32.gmra.mxu0 %v317
        %v415 = vpop.f32.mrf.mxu0
        %v416 = vadd.f32 0.0, %v415
        %v417 = vpop.f32.mrf.mxu0
        %418 = vmatprep.mubr.f32.mxu0 0.0
        %419 = vmatmul.mubr.f32.gmra.mxu0 %v318
        %v420 = vpop.f32.mrf.mxu0
        %v421 = vadd.f32 0.0, %v420
        %v422 = vpop.f32.mrf.mxu0
        %423 = vmatprep.mubr.f32.mxu0 0.0
        %424 = vmatmul.mubr.f32.gmra.mxu0 %v319
        %v425 = vpop.f32.mrf.mxu0
        %v426 = vadd.f32 0.0, %v425
        %v427 = vpop.f32.mrf.mxu0
        %428 = vmatprep.mubr.f32.mxu0 0.0
        %429 = vmatmul.mubr.f32.gmra.mxu0 %v320
        %v430 = vpop.f32.mrf.mxu0
        %v431 = vadd.f32 0.0, %v430
        %v432 = vpop.f32.mrf.mxu0
        %433 = vmatprep.mubr.f32.mxu0 0.0
        %434 = vmatmul.mubr.f32.gmra.mxu0 %v321
        %v435 = vpop.f32.mrf.mxu0
        %v436 = vadd.f32 0.0, %v435
        %v437 = vpop.f32.mrf.mxu0
        %438 = vmatprep.mubr.f32.mxu0 0.0
        %439 = vmatmul.mubr.f32.gmra.mxu0 %v322
        %v440 = vpop.f32.mrf.mxu0
        %v441 = vadd.f32 0.0, %v440
        %v442 = vpop.f32.mrf.mxu0
        %443 = vmatprep.mubr.f32.mxu0 0.0
        %444 = vmatmul.mubr.f32.gmra.mxu0 %v323
        %v445 = vpop.f32.mrf.mxu0
        %v446 = vadd.f32 0.0, %v445
        %v447 = vpop.f32.mrf.mxu0
        %448 = vmatprep.mubr.f32.mxu0 0.0
        %449 = vmatmul.mubr.f32.gmra.mxu0 %v324
        %v450 = vpop.f32.mrf.mxu0
        %v451 = vadd.f32 0.0, %v450
        %v452 = vpop.f32.mrf.mxu0
        %453 = vmatprep.mubr.f32.mxu0 0.0
        %454 = vmatmul.mubr.f32.gmra.mxu0 %v325
        %v455 = vpop.f32.mrf.mxu0
        %v456 = vadd.f32 0.0, %v455
        %v457 = vpop.f32.mrf.mxu0
        %458 = vmatprep.mubr.f32.mxu0 0.0
        %459 = vmatmul.mubr.f32.gmra.mxu0 %v326
        %v460 = vpop.f32.mrf.mxu0
        %v461 = vadd.f32 0.0, %v460
        %v462 = vpop.f32.mrf.mxu0
        %463 = vmatprep.mubr.f32.mxu0 0.0
        %464 = vmatmul.mubr.f32.gmra.mxu0 %v327
        %v465 = vpop.f32.mrf.mxu0
        %v466 = vadd.f32 0.0, %v465
        %v467 = vpop.f32.mrf.mxu0
        %468 = vmatprep.mubr.f32.mxu0 0.0
        %469 = vmatmul.mubr.f32.gmra.mxu0 %v328
        %v470 = vpop.f32.mrf.mxu0
        %v471 = vadd.f32 0.0, %v470
        %v472 = vpop.f32.mrf.mxu0
        %473 = vmatprep.mubr.f32.mxu0 0.0
        %474 = vmatmul.mubr.f32.gmra.mxu0 %v329
        %v475 = vpop.f32.mrf.mxu0
        %v476 = vadd.f32 0.0, %v475
        %v477 = vpop.f32.mrf.mxu0
        %478 = vmatprep.mubr.f32.mxu0 0.0
        %479 = vmatmul.mubr.f32.gmra.mxu0 %v330
        %v480 = vpop.f32.mrf.mxu0
        %v481 = vadd.f32 0.0, %v480
        %v482 = vpop.f32.mrf.mxu0
        %483 = vmatprep.mubr.f32.mxu0 0.0
        %484 = vmatmul.mubr.f32.gmra.mxu0 %v331
        %v485 = vpop.f32.mrf.mxu0
        %v486 = vadd.f32 0.0, %v485
        %v487 = vpop.f32.mrf.mxu0
        %488 = vmatprep.mubr.f32.mxu0 0.0
        %489 = vmatmul.mubr.f32.gmra.mxu0 %v332
        %v490 = vpop.f32.mrf.mxu0
        %v491 = vadd.f32 0.0, %v490
        %v492 = vpop.f32.mrf.mxu0
        %493 = vdwg.mxu0
        %v494 = vadd.f32 %v301, %v416
        %v495 = vadd.f32 %v302, %v421
        %v496 = vadd.f32 %v303, %v426
        %v497 = vadd.f32 %v304, %v431
        %v498 = vadd.f32 %v305, %v436
        %v499 = vadd.f32 %v306, %v441
        %v500 = vadd.f32 %v307, %v446
        %v501 = vadd.f32 %v308, %v451
        %v502 = vadd.f32 %v309, %v456
        %v503 = vadd.f32 %v310, %v461
        %v504 = vadd.f32 %v311, %v466
        %v505 = vadd.f32 %v312, %v471
        %v506 = vadd.f32 %v313, %v476
        %v507 = vadd.f32 %v314, %v481
        %v508 = vadd.f32 %v315, %v486
        %v509 = vadd.f32 %v316, %v491
        %510 = vst [vmem:[#allocation2] sm:$0xff] %v494
        %511 = vst [vmem:[#allocation2 + $0x8] sm:$0xff] %v495
        %512 = vst [vmem:[#allocation2 + $0x10] sm:$0xff] %v496
        %513 = vst [vmem:[#allocation2 + $0x18] sm:$0xff] %v497
        %514 = vst [vmem:[#allocation2 + $0x20] sm:$0xff] %v498
        %515 = vst [vmem:[#allocation2 + $0x28] sm:$0xff] %v499
        %516 = vst [vmem:[#allocation2 + $0x30] sm:$0xff] %v500
        %517 = vst [vmem:[#allocation2 + $0x38] sm:$0xff] %v501
        %518 = vst [vmem:[#allocation2 + $0x40] sm:$0xff] %v502
        %519 = vst [vmem:[#allocation2 + $0x48] sm:$0xff] %v503
        %520 = vst [vmem:[#allocation2 + $0x50] sm:$0xff] %v504
        %521 = vst [vmem:[#allocation2 + $0x58] sm:$0xff] %v505
        %522 = vst [vmem:[#allocation2 + $0x60] sm:$0xff] %v506
        %523 = vst [vmem:[#allocation2 + $0x68] sm:$0xff] %v507
        %524 = vst [vmem:[#allocation2 + $0x70] sm:$0xff] %v508
        %525 = vst [vmem:[#allocation2 + $0x78] sm:$0xff] %v509
        // Predicated region
        $region45: #{tpu_custom_call.1} parent=31 // pred_check
          %p526 = pneg %p274
        $region46: #{tpu_custom_call.1} parent=31 // pred_check_branch
          %528 = sbr.rel (%p526) target = $region48
        $region47: #{tpu_custom_call.1} parent=31 // pred_region
          %v529 = vld [vmem:[#allocation2] sm:$0xff]
          %v530 = vld [vmem:[#allocation2 + $0x8] sm:$0xff]
          %v531 = vld [vmem:[#allocation2 + $0x10] sm:$0xff]
          %v532 = vld [vmem:[#allocation2 + $0x18] sm:$0xff]
          %v533 = vld [vmem:[#allocation2 + $0x20] sm:$0xff]
          %v534 = vld [vmem:[#allocation2 + $0x28] sm:$0xff]
          %v535 = vld [vmem:[#allocation2 + $0x30] sm:$0xff]
          %v536 = vld [vmem:[#allocation2 + $0x38] sm:$0xff]
          %v537 = vld [vmem:[#allocation2 + $0x40] sm:$0xff]
          %v538 = vld [vmem:[#allocation2 + $0x48] sm:$0xff]
          %v539 = vld [vmem:[#allocation2 + $0x50] sm:$0xff]
          %v540 = vld [vmem:[#allocation2 + $0x58] sm:$0xff]
          %v541 = vld [vmem:[#allocation2 + $0x60] sm:$0xff]
          %v542 = vld [vmem:[#allocation2 + $0x68] sm:$0xff]
          %v543 = vld [vmem:[#allocation2 + $0x70] sm:$0xff]
          %v544 = vld [vmem:[#allocation2 + $0x78] sm:$0xff]
          %545 = vst [vmem:[%s267] sm:$0xff] %v529
          %546 = vst [vmem:[%s267 + $0x8] sm:$0xff] %v530
          %547 = vst [vmem:[%s267 + $0x10] sm:$0xff] %v531
          %548 = vst [vmem:[%s267 + $0x18] sm:$0xff] %v532
          %549 = vst [vmem:[%s267 + $0x20] sm:$0xff] %v533
          %550 = vst [vmem:[%s267 + $0x28] sm:$0xff] %v534
          %551 = vst [vmem:[%s267 + $0x30] sm:$0xff] %v535
          %552 = vst [vmem:[%s267 + $0x38] sm:$0xff] %v536
          %553 = vst [vmem:[%s267 + $0x40] sm:$0xff] %v537
          %554 = vst [vmem:[%s267 + $0x48] sm:$0xff] %v538
          %555 = vst [vmem:[%s267 + $0x50] sm:$0xff] %v539
          %556 = vst [vmem:[%s267 + $0x58] sm:$0xff] %v540
          %557 = vst [vmem:[%s267 + $0x60] sm:$0xff] %v541
          %558 = vst [vmem:[%s267 + $0x68] sm:$0xff] %v542
          %559 = vst [vmem:[%s267 + $0x70] sm:$0xff] %v543
          %560 = vst [vmem:[%s267 + $0x78] sm:$0xff] %v544
        $region48: #{tpu_custom_call.1} parent=31 // pred_fallthru
          _
        %s561 = sand.u32 %s134, 1
        %s562 = scalar_lea.sflag [#allocation5], %s561
        %s563 = sand.u32 %s134, 1
        %s564 = smul.addr %s563, 128
        %s565 = scalar_lea.vmem [#allocation8], %s564
        // Predicated region
        $region49: #{tpu_custom_call.1} parent=31 // pred_check
          %p566 = pneg %p144
        $region50: #{tpu_custom_call.1} parent=31 // pred_check_branch
          %568 = sbr.rel (%p566) target = $region52
        $region51: #{tpu_custom_call.1} parent=31 // pred_region
          %s569 = smul.u32 16, %s28
          %s571 = ssub.s32 2048, 2048
          %572 = vsyncadd %s562, %s571
          %s573 = smul.addr %s569, 3
          %s574 = sadd.s32 %s29, %s573
          %s575 = smul.addr %s574, 128
          %s576 = scalar_lea.hbm %s3, %s575
          %s577 = sshll.u32 %s565, 4
          %s578 = int_to_ptr.vmem [resolvable:$true] %s577
          %583 = dma.vmem_to_hbm [thread:$0]  %s578, 2048, %s576, %s562, 128, 384, 8
        $region52: #{tpu_custom_call.1} parent=31 // pred_fallthru
          _
      $region32: #{tpu_custom_call.1} parent=5 // pred_fallthru
        _
      %p584 = scmp.le.s32.totalorder 2, %s18
      // Predicated region
      $region53: #{tpu_custom_call.1} parent=5 // pred_check
        %p585 = pneg %p584
      $region54: #{tpu_custom_call.1} parent=5 // pred_check_branch
        %587 = sbr.rel (%p585) target = $region56
      $region55: #{tpu_custom_call.1} parent=5 // pred_region
        %s588 = ssub.s32 %s18, 2
        // Predicated region
        $region57: #{tpu_custom_call.1} parent=55 // pred_check
          %p589 = pneg %p150
        $region58: #{tpu_custom_call.1} parent=55 // pred_check_branch
          %591 = sbr.rel (%p589) target = $region60
        $region59: #{tpu_custom_call.1} parent=55 // pred_region
          %s592 = sand.u32 %s135, 1
          %s593 = scalar_lea.sflag [#allocation5], %s592
          %s594 = sand.u32 %s135, 1
          %s595 = smul.addr %s594, 128
          %s596 = scalar_lea.vmem [#allocation8], %s595
          %597 = dma.done %s593, 2048
        $region60: #{tpu_custom_call.1} parent=55 // pred_fallthru
          _
      $region56: #{tpu_custom_call.1} parent=5 // pred_fallthru
        _
    $region6: #{tpu_custom_call.1} parent=1 // loop_footer
      %s22 = sadd.s32 1, %s18
    $region7: #{tpu_custom_call.1} parent=1 // loop_footer_branch
      %17 = sbr.rel target = $region3
    $region8: #{tpu_custom_call.1} parent=1 // loop_exit
      _
    %598 = vsyncpa [#allocation4], 1
    %s599 = scalar_lea.sflag [#allocation4], 1
    %600 = vsyncpa %s599, 1
    %601 = vsyncpa [#allocation7], 1
    %s602 = scalar_lea.sflag [#allocation7], 1
    %603 = vsyncpa %s602, 1
    %604 = vsyncpa [#allocation5], 1
    %s605 = scalar_lea.sflag [#allocation5], 1
    %606 = vsyncpa %s605, 1

</llo_original>
